<compile_context>
chip_gen: v6e
topology: v6e:2x2x1
jax: 0.10.0
libtpu: 0.0.40
codegen_flags: <defaults>
</compile_context>

<pallas_src>
import functools

import jax
import jax.numpy as jnp
from jax.experimental import pallas as pl
from jax.experimental.pallas import tpu as pltpu


def _multistream_kernel(x_ref, w1_ref, b1_ref, wfc_ref, bfc_ref, o_ref):
    """One batch tile of the fused multi-stream head.

    x_ref  : (M, TB, H)   per-stream inputs (compute dtype)
    w1_ref : (M, H, C)    per-stream Linear weights (compute dtype)
    b1_ref : (M, 1, C)    per-stream Linear biases (f32)
    wfc_ref: (M, C, Cp)   fused-FC weight, split per stream along K (compute dtype)
    bfc_ref: (1, Cp)      fused-FC bias (f32)
    o_ref  : (TB, Cp)     output tile (f32)
    """
    num_models = x_ref.shape[0]
    acc = jnp.zeros(o_ref.shape, jnp.float32)
    # Static unroll over streams (M is small & compile-time constant).
    # Total MXU work = M*H*C + M*C*Cp -- no block-diagonal M^2 blow-up.
    for m in range(num_models):
        # Stage 1: per-stream Linear, f32 accumulation on the MXU.
        y = jnp.dot(x_ref[m], w1_ref[m], preferred_element_type=jnp.float32)
        # Bias + ReLU stay f32 on the VPU (v5e has no bf16 VPU path).
        y = jnp.maximum(y + b1_ref[m], 0.0)
        # Stage 2: this stream's K-slice of the fused FC, accumulated in f32.
        acc = acc + jnp.dot(y.astype(wfc_ref.dtype), wfc_ref[m],
                            preferred_element_type=jnp.float32)
    o_ref[...] = (acc + bfc_ref[...]).astype(o_ref.dtype)


def prepare_params(w_stream, b_stream, w_fc, b_fc, *,
                   compute_dtype=jnp.float32, lane=128):
    """One-time (parameter-load-time) prep, hoisted out of the hot path.

    - pads the FC output axis to a multiple of 128 lanes (unmasked final store),
    - reshapes the FC weight to (M, C, Cp) so each stream contracts its own
      K-slice (ordering matches torch.stack(dim=1).view(-1, M*C)),
    - casts matmul operands to `compute_dtype` (use jnp.bfloat16 on
      v5e/v6e/v7x for native-MXU throughput); biases stay f32.
    """
    M, H, C = w_stream.shape
    Cp = pl.cdiv(C, lane) * lane
    w_fc_p = (jnp.zeros((M * C, Cp), jnp.float32)
              .at[:, :C].set(w_fc.astype(jnp.float32))
              .reshape(M, C, Cp))
    b_fc_p = jnp.zeros((1, Cp), jnp.float32).at[:, :C].set(b_fc.astype(jnp.float32))
    return {
        "w_stream": w_stream.astype(compute_dtype),                    # (M, H, C)
        "b_stream": b_stream.astype(jnp.float32).reshape(M, 1, C),     # (M, 1, C)
        "w_fc": w_fc_p.astype(compute_dtype),                          # (M, C, Cp)
        "b_fc": b_fc_p,                                                # (1, Cp)
    }


@functools.partial(jax.jit, static_argnames=("block_b",))
def multistream_forward(x_stack, params, *, block_b=256):
    """x_stack: (M, B, H). params from prepare_params(). Returns (B, C) f32."""
    M, B, H = x_stack.shape
    w1 = params["w_stream"]
    C = w1.shape[-1]
    Cp = params["w_fc"].shape[-1]

    # Batch tiling: sublane-align B; a parallel grid over batch only matters
    # once B is large (keeps both v7x TensorCores busy); at B=8 grid=(1,).
    b_pad = pl.cdiv(B, 8) * 8
    tb = min(b_pad, block_b)
    b_pad = pl.cdiv(b_pad, tb) * tb
    grid = (b_pad // tb,)

    x = x_stack.astype(w1.dtype)
    if b_pad != B:
        x = jnp.zeros((M, b_pad, H), x.dtype).at[:, :B, :].set(x)

    out_p = pl.pallas_call(
        _multistream_kernel,
        out_shape=jax.ShapeDtypeStruct((b_pad, Cp), jnp.float32),  # pinned f32
        grid=grid,
        in_specs=[
            pl.BlockSpec((M, tb, H), lambda i: (0, i, 0)),
            pl.BlockSpec((M, H, C), lambda i: (0, 0, 0)),
            pl.BlockSpec((M, 1, C), lambda i: (0, 0, 0)),
            pl.BlockSpec((M, C, Cp), lambda i: (0, 0, 0)),
            pl.BlockSpec((1, Cp), lambda i: (0, 0)),
        ],
        out_specs=pl.BlockSpec((tb, Cp), lambda i: (i, 0)),
        compiler_params=pltpu.CompilerParams(
            dimension_semantics=("parallel",)),
        # NOTE: at production shapes on v7x (64 MiB VMEM / 32 MiB scoped
        # default), size tb so (x + weights + out) fits and set
        # vmem_limit_bytes here if needed; demo working set is ~50 KB.
    )(x, params["w_stream"], params["b_stream"], params["w_fc"], params["b_fc"])

    return out_p[:B, :C]


def multistream_reference(x_stack, w_stream, b_stream, w_fc, b_fc):
    # Pure-JAX reference mirroring the torch forward.
    M, B, H = x_stack.shape
    C = w_stream.shape[-1]
    ys = jnp.einsum("mbh,mhc->mbc", x_stack, w_stream) + b_stream[:, None, :]
    y = jnp.transpose(ys, (1, 0, 2)).reshape(B, M * C)   # stack(dim=1) + view
    return jnp.maximum(y, 0.0) @ w_fc + b_fc


if __name__ == "__main__":
    num_models = 3
    batch = 8
    hidden = 32
    n_classes = 16

    key = jax.random.PRNGKey(0)
    k_x, k_w, k_b, k_wfc, k_bfc = jax.random.split(key, 5)

    # Deterministic synthetic parameters (no checkpoint loading).
    x_stack = jax.random.normal(k_x, (num_models, batch, hidden), jnp.float32)
    w_stream = jax.random.normal(k_w, (num_models, hidden, n_classes), jnp.float32) * 0.1
    b_stream = jax.random.normal(k_b, (num_models, n_classes), jnp.float32) * 0.1
    w_fc = jax.random.normal(k_wfc, (num_models * n_classes, n_classes), jnp.float32) * 0.1
    b_fc = jax.random.normal(k_bfc, (n_classes,), jnp.float32) * 0.1

    ref = multistream_reference(x_stack, w_stream, b_stream, w_fc, b_fc)

    # f32-operand path (tight match to the f32 reference).
    params_f32 = prepare_params(w_stream, b_stream, w_fc, b_fc)
    out = jax.block_until_ready(multistream_forward(x_stack, params_f32))
    assert out.shape == (batch, n_classes)
    assert jnp.allclose(out, ref, atol=1e-4, rtol=1e-4), "f32 mismatch vs reference"

    # bf16-operand path (recommended on v5e/v6e/v7x): bf16 inside the dots,
    # f32 accumulation / bias / ReLU / output, looser tolerance.
    params_bf16 = prepare_params(w_stream, b_stream, w_fc, b_fc,
                                 compute_dtype=jnp.bfloat16)
    out_bf16 = jax.block_until_ready(multistream_forward(x_stack, params_bf16))
    assert out_bf16.shape == (batch, n_classes)
    assert jnp.allclose(out_bf16, ref, atol=2e-2, rtol=2e-2), "bf16 mismatch vs reference"

    print("KERNEL_OK")
</pallas_src>

<mosaic_0001>
module attributes {stable_mosaic.version = 11 : i64} {
  func.func @_multistream_kernel(%arg0: i32, %arg1: memref<3x8x32xf32, #tpu.memory_space<vmem>>, %arg2: memref<3x32x16xf32, #tpu.memory_space<vmem>>, %arg3: memref<3x1x16xf32, #tpu.memory_space<vmem>>, %arg4: memref<3x16x128xf32, #tpu.memory_space<vmem>>, %arg5: memref<1x128xf32, #tpu.memory_space<vmem>>, %arg6: memref<8x128xf32, #tpu.memory_space<vmem>>) attributes {dimension_semantics = [#tpu.dimension_semantics<parallel>], iteration_bounds = array<i64: 1>, scalar_prefetch = 0 : i64, scratch_operands = 0 : i64, tpu.core_type = #tpu.core_type<tc>, window_params = [{transform_indices = @transform_0, window_bounds = array<i64: 3, 8, 32>}, {pipeline_mode = #tpu.pipeline_mode<synchronous>, transform_indices = @transform_1, window_bounds = array<i64: 3, 32, 16>}, {pipeline_mode = #tpu.pipeline_mode<synchronous>, transform_indices = @transform_2, window_bounds = array<i64: 3, 1, 16>}, {pipeline_mode = #tpu.pipeline_mode<synchronous>, transform_indices = @transform_3, window_bounds = array<i64: 3, 16, 128>}, {pipeline_mode = #tpu.pipeline_mode<synchronous>, transform_indices = @transform_4, window_bounds = array<i64: 1, 128>}, {transform_indices = @transform_5, window_bounds = array<i64: 8, 128>}]} {
    %cst = arith.constant 0.000000e+00 : f32
    %0 = vector.broadcast %cst : f32 to vector<8x128xf32>
    %c0 = arith.constant 0 : index
    %c0_0 = arith.constant 0 : index
    %c0_1 = arith.constant 0 : index
    %1 = vector.load %arg1[%c0, %c0_0, %c0_1] : memref<3x8x32xf32, #tpu.memory_space<vmem>>, vector<1x8x32xf32>
    %2 = vector.shape_cast %1 : vector<1x8x32xf32> to vector<8x32xf32>
    %c0_2 = arith.constant 0 : index
    %c0_3 = arith.constant 0 : index
    %c0_4 = arith.constant 0 : index
    %3 = vector.load %arg2[%c0_2, %c0_3, %c0_4] : memref<3x32x16xf32, #tpu.memory_space<vmem>>, vector<1x32x16xf32>
    %4 = vector.shape_cast %3 : vector<1x32x16xf32> to vector<32x16xf32>
    %cst_5 = arith.constant dense<0.000000e+00> : vector<8x16xf32>
    %5 = tpu.matmul %2, %4, %cst_5 {dimension_numbers = #tpu.dot_dimension_numbers<[1], [0], [0], [1], [0, 0, 1, 1], [], []>} : vector<8x32xf32>, vector<32x16xf32>, vector<8x16xf32> -> vector<8x16xf32>
    %c0_6 = arith.constant 0 : index
    %c0_7 = arith.constant 0 : index
    %c0_8 = arith.constant 0 : index
    %6 = vector.load %arg3[%c0_6, %c0_7, %c0_8] : memref<3x1x16xf32, #tpu.memory_space<vmem>>, vector<1x1x16xf32>
    %7 = vector.shape_cast %6 : vector<1x1x16xf32> to vector<1x16xf32>
    %8 = vector.broadcast %7 : vector<1x16xf32> to vector<8x16xf32>
    %9 = arith.addf %5, %8 : vector<8x16xf32>
    %cst_9 = arith.constant 0.000000e+00 : f32
    %10 = vector.broadcast %cst_9 : f32 to vector<8x16xf32>
    %11 = arith.maximumf %9, %10 : vector<8x16xf32>
    %c0_10 = arith.constant 0 : index
    %c0_11 = arith.constant 0 : index
    %c0_12 = arith.constant 0 : index
    %12 = vector.load %arg4[%c0_10, %c0_11, %c0_12] : memref<3x16x128xf32, #tpu.memory_space<vmem>>, vector<1x16x128xf32>
    %13 = vector.shape_cast %12 : vector<1x16x128xf32> to vector<16x128xf32>
    %cst_13 = arith.constant dense<0.000000e+00> : vector<8x128xf32>
    %14 = tpu.matmul %11, %13, %cst_13 {dimension_numbers = #tpu.dot_dimension_numbers<[1], [0], [0], [1], [0, 0, 1, 1], [], []>} : vector<8x16xf32>, vector<16x128xf32>, vector<8x128xf32> -> vector<8x128xf32>
    %15 = arith.addf %0, %14 : vector<8x128xf32>
    %c1 = arith.constant 1 : index
    %c0_14 = arith.constant 0 : index
    %c0_15 = arith.constant 0 : index
    %16 = vector.load %arg1[%c1, %c0_14, %c0_15] : memref<3x8x32xf32, #tpu.memory_space<vmem>>, vector<1x8x32xf32>
    %17 = vector.shape_cast %16 : vector<1x8x32xf32> to vector<8x32xf32>
    %c1_16 = arith.constant 1 : index
    %c0_17 = arith.constant 0 : index
    %c0_18 = arith.constant 0 : index
    %18 = vector.load %arg2[%c1_16, %c0_17, %c0_18] : memref<3x32x16xf32, #tpu.memory_space<vmem>>, vector<1x32x16xf32>
    %19 = vector.shape_cast %18 : vector<1x32x16xf32> to vector<32x16xf32>
    %cst_19 = arith.constant dense<0.000000e+00> : vector<8x16xf32>
    %20 = tpu.matmul %17, %19, %cst_19 {dimension_numbers = #tpu.dot_dimension_numbers<[1], [0], [0], [1], [0, 0, 1, 1], [], []>} : vector<8x32xf32>, vector<32x16xf32>, vector<8x16xf32> -> vector<8x16xf32>
    %c1_20 = arith.constant 1 : index
    %c0_21 = arith.constant 0 : index
    %c0_22 = arith.constant 0 : index
    %21 = vector.load %arg3[%c1_20, %c0_21, %c0_22] : memref<3x1x16xf32, #tpu.memory_space<vmem>>, vector<1x1x16xf32>
    %22 = vector.shape_cast %21 : vector<1x1x16xf32> to vector<1x16xf32>
    %23 = vector.broadcast %22 : vector<1x16xf32> to vector<8x16xf32>
    %24 = arith.addf %20, %23 : vector<8x16xf32>
    %cst_23 = arith.constant 0.000000e+00 : f32
    %25 = vector.broadcast %cst_23 : f32 to vector<8x16xf32>
    %26 = arith.maximumf %24, %25 : vector<8x16xf32>
    %c1_24 = arith.constant 1 : index
    %c0_25 = arith.constant 0 : index
    %c0_26 = arith.constant 0 : index
    %27 = vector.load %arg4[%c1_24, %c0_25, %c0_26] : memref<3x16x128xf32, #tpu.memory_space<vmem>>, vector<1x16x128xf32>
    %28 = vector.shape_cast %27 : vector<1x16x128xf32> to vector<16x128xf32>
    %cst_27 = arith.constant dense<0.000000e+00> : vector<8x128xf32>
    %29 = tpu.matmul %26, %28, %cst_27 {dimension_numbers = #tpu.dot_dimension_numbers<[1], [0], [0], [1], [0, 0, 1, 1], [], []>} : vector<8x16xf32>, vector<16x128xf32>, vector<8x128xf32> -> vector<8x128xf32>
    %30 = arith.addf %15, %29 : vector<8x128xf32>
    %c2 = arith.constant 2 : index
    %c0_28 = arith.constant 0 : index
    %c0_29 = arith.constant 0 : index
    %31 = vector.load %arg1[%c2, %c0_28, %c0_29] : memref<3x8x32xf32, #tpu.memory_space<vmem>>, vector<1x8x32xf32>
    %32 = vector.shape_cast %31 : vector<1x8x32xf32> to vector<8x32xf32>
    %c2_30 = arith.constant 2 : index
    %c0_31 = arith.constant 0 : index
    %c0_32 = arith.constant 0 : index
    %33 = vector.load %arg2[%c2_30, %c0_31, %c0_32] : memref<3x32x16xf32, #tpu.memory_space<vmem>>, vector<1x32x16xf32>
    %34 = vector.shape_cast %33 : vector<1x32x16xf32> to vector<32x16xf32>
    %cst_33 = arith.constant dense<0.000000e+00> : vector<8x16xf32>
    %35 = tpu.matmul %32, %34, %cst_33 {dimension_numbers = #tpu.dot_dimension_numbers<[1], [0], [0], [1], [0, 0, 1, 1], [], []>} : vector<8x32xf32>, vector<32x16xf32>, vector<8x16xf32> -> vector<8x16xf32>
    %c2_34 = arith.constant 2 : index
    %c0_35 = arith.constant 0 : index
    %c0_36 = arith.constant 0 : index
    %36 = vector.load %arg3[%c2_34, %c0_35, %c0_36] : memref<3x1x16xf32, #tpu.memory_space<vmem>>, vector<1x1x16xf32>
    %37 = vector.shape_cast %36 : vector<1x1x16xf32> to vector<1x16xf32>
    %38 = vector.broadcast %37 : vector<1x16xf32> to vector<8x16xf32>
    %39 = arith.addf %35, %38 : vector<8x16xf32>
    %cst_37 = arith.constant 0.000000e+00 : f32
    %40 = vector.broadcast %cst_37 : f32 to vector<8x16xf32>
    %41 = arith.maximumf %39, %40 : vector<8x16xf32>
    %c2_38 = arith.constant 2 : index
    %c0_39 = arith.constant 0 : index
    %c0_40 = arith.constant 0 : index
    %42 = vector.load %arg4[%c2_38, %c0_39, %c0_40] : memref<3x16x128xf32, #tpu.memory_space<vmem>>, vector<1x16x128xf32>
    %43 = vector.shape_cast %42 : vector<1x16x128xf32> to vector<16x128xf32>
    %cst_41 = arith.constant dense<0.000000e+00> : vector<8x128xf32>
    %44 = tpu.matmul %41, %43, %cst_41 {dimension_numbers = #tpu.dot_dimension_numbers<[1], [0], [0], [1], [0, 0, 1, 1], [], []>} : vector<8x16xf32>, vector<16x128xf32>, vector<8x128xf32> -> vector<8x128xf32>
    %45 = arith.addf %30, %44 : vector<8x128xf32>
    %c0_42 = arith.constant 0 : index
    %c0_43 = arith.constant 0 : index
    %46 = vector.load %arg5[%c0_42, %c0_43] : memref<1x128xf32, #tpu.memory_space<vmem>>, vector<1x128xf32>
    %47 = vector.broadcast %46 : vector<1x128xf32> to vector<8x128xf32>
    %48 = arith.addf %45, %47 : vector<8x128xf32>
    %c0_44 = arith.constant 0 : index
    %c0_45 = arith.constant 0 : index
    %49 = vector.load %arg6[%c0_44, %c0_45] : memref<8x128xf32, #tpu.memory_space<vmem>>, vector<8x128xf32>
    tpu.vector_store %arg6[%c0_44, %c0_45], %48 {strides = array<i32>} : memref<8x128xf32, #tpu.memory_space<vmem>>, vector<8x128xf32>,
    return
  }
  func.func @transform_0(%arg0: i32) -> (i32, i32, i32) {
    %c0_i32 = arith.constant 0 : i32
    %c0_i32_0 = arith.constant 0 : i32
    %c0_i32_1 = arith.constant 0 : i32
    return %c0_i32, %arg0, %c0_i32_0 : i32, i32, i32
  }
  func.func @transform_1(%arg0: i32) -> (i32, i32, i32) {
    %c0_i32 = arith.constant 0 : i32
    %c0_i32_0 = arith.constant 0 : i32
    %c0_i32_1 = arith.constant 0 : i32
    %c0_i32_2 = arith.constant 0 : i32
    return %c0_i32, %c0_i32_0, %c0_i32_1 : i32, i32, i32
  }
  func.func @transform_2(%arg0: i32) -> (i32, i32, i32) {
    %c0_i32 = arith.constant 0 : i32
    %c0_i32_0 = arith.constant 0 : i32
    %c0_i32_1 = arith.constant 0 : i32
    %c0_i32_2 = arith.constant 0 : i32
    return %c0_i32, %c0_i32_0, %c0_i32_1 : i32, i32, i32
  }
  func.func @transform_3(%arg0: i32) -> (i32, i32, i32) {
    %c0_i32 = arith.constant 0 : i32
    %c0_i32_0 = arith.constant 0 : i32
    %c0_i32_1 = arith.constant 0 : i32
    %c0_i32_2 = arith.constant 0 : i32
    return %c0_i32, %c0_i32_0, %c0_i32_1 : i32, i32, i32
  }
  func.func @transform_4(%arg0: i32) -> (i32, i32) {
    %c0_i32 = arith.constant 0 : i32
    %c0_i32_0 = arith.constant 0 : i32
    %c0_i32_1 = arith.constant 0 : i32
    return %c0_i32, %c0_i32_0 : i32, i32
  }
  func.func @transform_5(%arg0: i32) -> (i32, i32) {
    %c0_i32 = arith.constant 0 : i32
    %c0_i32_0 = arith.constant 0 : i32
    return %arg0, %c0_i32 : i32, i32
  }
}

</mosaic_0001>

<llo_original>
// kernel: multistream_forward.1
$region0: #{multistream_forward.1}
  #allocation0 [shape = 'u32[]', space=smem, size = 0x4, offset = 0x4, fixed_abs, tag = 'smem constant byte address 0x4 - core index']
  #allocation1 [shape = 'u32[144,128]{1,0:T(1,128)}', space=vmem, size = 0x12000, scoped, tag = 'internal scratch']
  %s0 = inlined_call_operand.vmem [shape: f32[3,8,32], index: 0, kind: input, shape index: {}]
  %s1 = inlined_call_operand.vmem [shape: f32[3,32,16], index: 1, kind: input, shape index: {}]
  %s2 = inlined_call_operand.vmem [shape: f32[3,1,16], index: 2, kind: input, shape index: {}]
  %s3 = inlined_call_operand.vmem [shape: f32[3,16,128], index: 3, kind: input, shape index: {}]
  %s4 = inlined_call_operand.vmem [shape: f32[1,128], index: 4, kind: input, shape index: {}]
  %s5 = inlined_call_operand.hbm [shape: f32[8,128], index: 5, kind: output, shape index: {}]
  %s6 = sld [smem:[#allocation0]]
  $region30: #{multistream_forward.1} parent=0
    _
  %s8 = ssub.s32 1, %s6
  %s9 = scalar_select 0, %s8, %s6
  $region1: #{multistream_forward.1} parent=0
    #allocation2 [shape = 'u8[4096]{0}', space=vmem, size = 0x1000, scoped, tag = 'output window, operand 0, single buffered']
    #allocation3 [shape = 's32[1]{0}', space=sflag, size = 0x4, scoped, tag = 'scoped memory for multistream_forward.1']
    %10 = vsyncpa [#allocation3], 0
    // Predicated region
    $region2: #{multistream_forward.1} parent=1 // pred_check
      _
    $region3: #{multistream_forward.1} parent=1 // pred_check_branch
      %12 = sbr.rel (0) target = $region5
    $region4: #{multistream_forward.1} parent=1 // pred_region
      _
    $region5: #{multistream_forward.1} parent=1 // pred_fallthru
      _
    // Predicated region
    $region6: #{multistream_forward.1} parent=1 // pred_check
      _
    $region7: #{multistream_forward.1} parent=1 // pred_check_branch
      %14 = sbr.rel (0) target = $region9
    $region8: #{multistream_forward.1} parent=1 // pred_region
      _
    $region9: #{multistream_forward.1} parent=1 // pred_fallthru
      _
    // Predicated region
    $region10: #{multistream_forward.1} parent=1 // pred_check
      _
    $region11: #{multistream_forward.1} parent=1 // pred_check_branch
      %16 = sbr.rel (0) target = $region13
    $region12: #{multistream_forward.1} parent=1 // pred_region
      _
    $region13: #{multistream_forward.1} parent=1 // pred_fallthru
      _
    // Predicated region
    $region14: #{multistream_forward.1} parent=1 // pred_check
      _
    $region15: #{multistream_forward.1} parent=1 // pred_check_branch
      %18 = sbr.rel (0) target = $region17
    $region16: #{multistream_forward.1} parent=1 // pred_region
      _
    $region17: #{multistream_forward.1} parent=1 // pred_fallthru
      _
    // Predicated region
    $region18: #{multistream_forward.1} parent=1 // pred_check
      _
    $region19: #{multistream_forward.1} parent=1 // pred_check_branch
      %20 = sbr.rel (0) target = $region21
    $region20: #{multistream_forward.1} parent=1 // pred_region
      _
    $region21: #{multistream_forward.1} parent=1 // pred_fallthru
      _
    %v21 = vld [vmem:[%s0] sm:$0xff]
    %v22 = vld [vmem:[%s1] sm:$0xff]
    %v23 = vld [vmem:[%s1 + $0x8] sm:$0xff]
    %v24 = vld [vmem:[%s1 + $0x10] sm:$0xff]
    %v25 = vld [vmem:[%s1 + $0x18] sm:$0xff]
    %v26 = vld [vmem:[%s2] sm:$0x1]
    %v28 = vlaneseq
    %v29 = vshrl.u32 %v28, 7
    %v30 = vsub.s32 0, %v29
    %v31 = vrot.slane %v26, %v30
    %vm33 = vcmask 261120
    %v35 = vsel %vm33, %v21, 0
    %37 = vmatprep.subr.mxu0 0.0
    %38 = vmatpush1.msra.mxu0 0.0
    %39 = vmatprep.subr.mxu0 0.0
    %40 = vmatpush1.msra.mxu0 0.0
    %41 = vmatprep.subr.mxu0 0.0
    %42 = vmatpush1.msra.mxu0 0.0
    %43 = vmatprep.subr.mxu0 0.0
    %44 = vmatpush1.msra.mxu0 0.0
    %45 = vmatprep.subr.mxu0 0.0
    %46 = vmatpush1.msra.mxu0 0.0
    %47 = vmatprep.subr.mxu0 0.0
    %48 = vmatpush1.msra.mxu0 0.0
    %49 = vmatprep.subr.mxu0 0.0
    %50 = vmatpush1.msra.mxu0 0.0
    %51 = vmatprep.subr.mxu0 0.0
    %52 = vmatpush1.msra.mxu0 0.0
    %53 = vmatprep.subr.mxu0 0.0
    %54 = vmatpush1.msra.mxu0 0.0
    %55 = vmatprep.subr.mxu0 0.0
    %56 = vmatpush1.msra.mxu0 0.0
    %57 = vmatprep.subr.mxu0 0.0
    %58 = vmatpush1.msra.mxu0 0.0
    %59 = vmatprep.subr.mxu0 0.0
    %60 = vmatpush1.msra.mxu0 0.0
    %61 = vmatprep.subr.mxu0 0.0
    %62 = vmatpush1.msra.mxu0 %v25
    %63 = vmatprep.subr.mxu0 0.0
    %64 = vmatpush1.msra.mxu0 %v24
    %65 = vmatprep.subr.mxu0 0.0
    %66 = vmatpush1.msra.mxu0 %v23
    %67 = vmatprep.subr.mxu0 0.0
    %68 = vmatpush1.msra.mxu0 %v22
    %69 = vmatprep.subr.mxu0 0.0
    %70 = vmatpush2.msra.mxu0 0.0
    %71 = vmatprep.subr.mxu0 0.0
    %72 = vmatpush2.msra.mxu0 0.0
    %73 = vmatprep.subr.mxu0 0.0
    %74 = vmatpush2.msra.mxu0 0.0
    %75 = vmatprep.subr.mxu0 0.0
    %76 = vmatpush2.msra.mxu0 0.0
    %77 = vmatprep.subr.mxu0 0.0
    %78 = vmatpush2.msra.mxu0 0.0
    %79 = vmatprep.subr.mxu0 0.0
    %80 = vmatpush2.msra.mxu0 0.0
    %81 = vmatprep.subr.mxu0 0.0
    %82 = vmatpush2.msra.mxu0 0.0
    %83 = vmatprep.subr.mxu0 0.0
    %84 = vmatpush2.msra.mxu0 0.0
    %85 = vmatprep.subr.mxu0 0.0
    %86 = vmatpush2.msra.mxu0 0.0
    %87 = vmatprep.subr.mxu0 0.0
    %88 = vmatpush2.msra.mxu0 0.0
    %89 = vmatprep.subr.mxu0 0.0
    %90 = vmatpush2.msra.mxu0 0.0
    %91 = vmatprep.subr.mxu0 0.0
    %92 = vmatpush2.msra.mxu0 0.0
    %93 = vmatprep.subr.mxu0 0.0
    %94 = vmatpush2.msra.mxu0 0.0
    %95 = vmatprep.subr.mxu0 0.0
    %96 = vmatpush2.msra.mxu0 0.0
    %97 = vmatprep.subr.mxu0 0.0
    %98 = vmatpush2.msra.mxu0 0.0
    %99 = vmatprep.subr.mxu0 0.0
    %100 = vmatpush2.msra.mxu0 0.0
    %101 = vmatprep.mubr.f32.mxu0 0.0
    %102 = vmatmul.mubr.f32.gmra.mxu0 %v35
    %v103 = vpop.f32.mrf.mxu0
    %v104 = vadd.f32 %v31, %v103
    %v105 = vpop.f32.mrf.mxu0
    %106 = vdwg.mxu0
    %v107 = vmax.f32 %v104, 0.0
    %v108 = vld [vmem:[%s3] sm:$0xff]
    %v109 = vld [vmem:[%s3 + $0x8] sm:$0xff]
    %s110 = scalar_lea.vmem %s0, 8
    %v111 = vld [vmem:[%s110] sm:$0xff]
    %s112 = scalar_lea.vmem %s1, 32
    %v113 = vld [vmem:[%s112] sm:$0xff]
    %v114 = vld [vmem:[%s112 + $0x8] sm:$0xff]
    %v115 = vld [vmem:[%s112 + $0x10] sm:$0xff]
    %v116 = vld [vmem:[%s112 + $0x18] sm:$0xff]
    %s117 = scalar_lea.vmem %s2, 1
    %v118 = vld [vmem:[%s117] sm:$0x1]
    %v120 = vlaneseq
    %v121 = vshrl.u32 %v120, 7
    %v122 = vsub.s32 0, %v121
    %v123 = vrot.slane %v118, %v122
    %v126 = vsel %vm33, %v111, 0
    %128 = vmatprep.subr.mxu0 0.0
    %129 = vmatpush1.msra.mxu0 0.0
    %130 = vmatprep.subr.mxu0 0.0
    %131 = vmatpush1.msra.mxu0 0.0
    %132 = vmatprep.subr.mxu0 0.0
    %133 = vmatpush1.msra.mxu0 0.0
    %134 = vmatprep.subr.mxu0 0.0
    %135 = vmatpush1.msra.mxu0 0.0
    %136 = vmatprep.subr.mxu0 0.0
    %137 = vmatpush1.msra.mxu0 0.0
    %138 = vmatprep.subr.mxu0 0.0
    %139 = vmatpush1.msra.mxu0 0.0
    %140 = vmatprep.subr.mxu0 0.0
    %141 = vmatpush1.msra.mxu0 0.0
    %142 = vmatprep.subr.mxu0 0.0
    %143 = vmatpush1.msra.mxu0 0.0
    %144 = vmatprep.subr.mxu0 0.0
    %145 = vmatpush1.msra.mxu0 0.0
    %146 = vmatprep.subr.mxu0 0.0
    %147 = vmatpush1.msra.mxu0 0.0
    %148 = vmatprep.subr.mxu0 0.0
    %149 = vmatpush1.msra.mxu0 0.0
    %150 = vmatprep.subr.mxu0 0.0
    %151 = vmatpush1.msra.mxu0 0.0
    %152 = vmatprep.subr.mxu0 0.0
    %153 = vmatpush1.msra.mxu0 %v116
    %154 = vmatprep.subr.mxu0 0.0
    %155 = vmatpush1.msra.mxu0 %v115
    %156 = vmatprep.subr.mxu0 0.0
    %157 = vmatpush1.msra.mxu0 %v114
    %158 = vmatprep.subr.mxu0 0.0
    %159 = vmatpush1.msra.mxu0 %v113
    %160 = vmatprep.subr.mxu0 0.0
    %161 = vmatpush2.msra.mxu0 0.0
    %162 = vmatprep.subr.mxu0 0.0
    %163 = vmatpush2.msra.mxu0 0.0
    %164 = vmatprep.subr.mxu0 0.0
    %165 = vmatpush2.msra.mxu0 0.0
    %166 = vmatprep.subr.mxu0 0.0
    %167 = vmatpush2.msra.mxu0 0.0
    %168 = vmatprep.subr.mxu0 0.0
    %169 = vmatpush2.msra.mxu0 0.0
    %170 = vmatprep.subr.mxu0 0.0
    %171 = vmatpush2.msra.mxu0 0.0
    %172 = vmatprep.subr.mxu0 0.0
    %173 = vmatpush2.msra.mxu0 0.0
    %174 = vmatprep.subr.mxu0 0.0
    %175 = vmatpush2.msra.mxu0 0.0
    %176 = vmatprep.subr.mxu0 0.0
    %177 = vmatpush2.msra.mxu0 0.0
    %178 = vmatprep.subr.mxu0 0.0
    %179 = vmatpush2.msra.mxu0 0.0
    %180 = vmatprep.subr.mxu0 0.0
    %181 = vmatpush2.msra.mxu0 0.0
    %182 = vmatprep.subr.mxu0 0.0
    %183 = vmatpush2.msra.mxu0 0.0
    %184 = vmatprep.subr.mxu0 0.0
    %185 = vmatpush2.msra.mxu0 0.0
    %186 = vmatprep.subr.mxu0 0.0
    %187 = vmatpush2.msra.mxu0 0.0
    %188 = vmatprep.subr.mxu0 0.0
    %189 = vmatpush2.msra.mxu0 0.0
    %190 = vmatprep.subr.mxu0 0.0
    %191 = vmatpush2.msra.mxu0 0.0
    %192 = vmatprep.mubr.f32.mxu0 0.0
    %193 = vmatmul.mubr.f32.gmra.mxu0 %v126
    %v194 = vpop.f32.mrf.mxu0
    %v195 = vadd.f32 %v123, %v194
    %v196 = vpop.f32.mrf.mxu0
    %197 = vdwg.mxu0
    %v198 = vmax.f32 %v195, 0.0
    %s199 = scalar_lea.vmem %s3, 16
    %v200 = vld [vmem:[%s199] sm:$0xff]
    %v201 = vld [vmem:[%s199 + $0x8] sm:$0xff]
    %vm202 = vcmask 130048
    %v204 = vsel %vm202, %v198, 0
    %206 = vmatprep.subr.mxu0 0.0
    %207 = vmatpush1.msra.mxu0 0.0
    %208 = vmatprep.subr.mxu0 0.0
    %209 = vmatpush1.msra.mxu0 0.0
    %210 = vmatprep.subr.mxu0 0.0
    %211 = vmatpush1.msra.mxu0 0.0
    %212 = vmatprep.subr.mxu0 0.0
    %213 = vmatpush1.msra.mxu0 0.0
    %214 = vmatprep.subr.mxu0 0.0
    %215 = vmatpush1.msra.mxu0 0.0
    %216 = vmatprep.subr.mxu0 0.0
    %217 = vmatpush1.msra.mxu0 0.0
    %218 = vmatprep.subr.mxu0 0.0
    %219 = vmatpush1.msra.mxu0 0.0
    %220 = vmatprep.subr.mxu0 0.0
    %221 = vmatpush1.msra.mxu0 0.0
    %222 = vmatprep.subr.mxu0 0.0
    %223 = vmatpush1.msra.mxu0 0.0
    %224 = vmatprep.subr.mxu0 0.0
    %225 = vmatpush1.msra.mxu0 0.0
    %226 = vmatprep.subr.mxu0 0.0
    %227 = vmatpush1.msra.mxu0 0.0
    %228 = vmatprep.subr.mxu0 0.0
    %229 = vmatpush1.msra.mxu0 0.0
    %230 = vmatprep.subr.mxu0 0.0
    %231 = vmatpush1.msra.mxu0 0.0
    %232 = vmatprep.subr.mxu0 0.0
    %233 = vmatpush1.msra.mxu0 0.0
    %234 = vmatprep.subr.mxu0 0.0
    %235 = vmatpush1.msra.mxu0 %v201
    %236 = vmatprep.subr.mxu0 0.0
    %237 = vmatpush1.msra.mxu0 %v200
    %238 = vmatprep.subr.mxu0 0.0
    %239 = vmatpush2.msra.mxu0 0.0
    %240 = vmatprep.subr.mxu0 0.0
    %241 = vmatpush2.msra.mxu0 0.0
    %242 = vmatprep.subr.mxu0 0.0
    %243 = vmatpush2.msra.mxu0 0.0
    %244 = vmatprep.subr.mxu0 0.0
    %245 = vmatpush2.msra.mxu0 0.0
    %246 = vmatprep.subr.mxu0 0.0
    %247 = vmatpush2.msra.mxu0 0.0
    %248 = vmatprep.subr.mxu0 0.0
    %249 = vmatpush2.msra.mxu0 0.0
    %250 = vmatprep.subr.mxu0 0.0
    %251 = vmatpush2.msra.mxu0 0.0
    %252 = vmatprep.subr.mxu0 0.0
    %253 = vmatpush2.msra.mxu0 0.0
    %254 = vmatprep.subr.mxu0 0.0
    %255 = vmatpush2.msra.mxu0 0.0
    %256 = vmatprep.subr.mxu0 0.0
    %257 = vmatpush2.msra.mxu0 0.0
    %258 = vmatprep.subr.mxu0 0.0
    %259 = vmatpush2.msra.mxu0 0.0
    %260 = vmatprep.subr.mxu0 0.0
    %261 = vmatpush2.msra.mxu0 0.0
    %262 = vmatprep.subr.mxu0 0.0
    %263 = vmatpush2.msra.mxu0 0.0
    %264 = vmatprep.subr.mxu0 0.0
    %265 = vmatpush2.msra.mxu0 0.0
    %266 = vmatprep.subr.mxu0 0.0
    %267 = vmatpush2.msra.mxu0 0.0
    %268 = vmatprep.subr.mxu0 0.0
    %269 = vmatpush2.msra.mxu0 0.0
    %270 = vmatprep.mubr.f32.mxu0 0.0
    %271 = vmatmul.mubr.f32.gmra.mxu0 %v204
    %v272 = vpop.f32.mrf.mxu0
    %v273 = vadd.f32 0.0, %v272
    %v274 = vpop.f32.mrf.mxu0
    %275 = vdwg.mxu0
    %v277 = vsel %vm202, %v107, 0
    %279 = vmatprep.subr.mxu0 0.0
    %280 = vmatpush1.msra.mxu0 0.0
    %281 = vmatprep.subr.mxu0 0.0
    %282 = vmatpush1.msra.mxu0 0.0
    %283 = vmatprep.subr.mxu0 0.0
    %284 = vmatpush1.msra.mxu0 0.0
    %285 = vmatprep.subr.mxu0 0.0
    %286 = vmatpush1.msra.mxu0 0.0
    %287 = vmatprep.subr.mxu0 0.0
    %288 = vmatpush1.msra.mxu0 0.0
    %289 = vmatprep.subr.mxu0 0.0
    %290 = vmatpush1.msra.mxu0 0.0
    %291 = vmatprep.subr.mxu0 0.0
    %292 = vmatpush1.msra.mxu0 0.0
    %293 = vmatprep.subr.mxu0 0.0
    %294 = vmatpush1.msra.mxu0 0.0
    %295 = vmatprep.subr.mxu0 0.0
    %296 = vmatpush1.msra.mxu0 0.0
    %297 = vmatprep.subr.mxu0 0.0
    %298 = vmatpush1.msra.mxu0 0.0
    %299 = vmatprep.subr.mxu0 0.0
    %300 = vmatpush1.msra.mxu0 0.0
    %301 = vmatprep.subr.mxu0 0.0
    %302 = vmatpush1.msra.mxu0 0.0
    %303 = vmatprep.subr.mxu0 0.0
    %304 = vmatpush1.msra.mxu0 0.0
    %305 = vmatprep.subr.mxu0 0.0
    %306 = vmatpush1.msra.mxu0 0.0
    %307 = vmatprep.subr.mxu0 0.0
    %308 = vmatpush1.msra.mxu0 %v109
    %309 = vmatprep.subr.mxu0 0.0
    %310 = vmatpush1.msra.mxu0 %v108
    %311 = vmatprep.subr.mxu0 0.0
    %312 = vmatpush2.msra.mxu0 0.0
    %313 = vmatprep.subr.mxu0 0.0
    %314 = vmatpush2.msra.mxu0 0.0
    %315 = vmatprep.subr.mxu0 0.0
    %316 = vmatpush2.msra.mxu0 0.0
    %317 = vmatprep.subr.mxu0 0.0
    %318 = vmatpush2.msra.mxu0 0.0
    %319 = vmatprep.subr.mxu0 0.0
    %320 = vmatpush2.msra.mxu0 0.0
    %321 = vmatprep.subr.mxu0 0.0
    %322 = vmatpush2.msra.mxu0 0.0
    %323 = vmatprep.subr.mxu0 0.0
    %324 = vmatpush2.msra.mxu0 0.0
    %325 = vmatprep.subr.mxu0 0.0
    %326 = vmatpush2.msra.mxu0 0.0
    %327 = vmatprep.subr.mxu0 0.0
    %328 = vmatpush2.msra.mxu0 0.0
    %329 = vmatprep.subr.mxu0 0.0
    %330 = vmatpush2.msra.mxu0 0.0
    %331 = vmatprep.subr.mxu0 0.0
    %332 = vmatpush2.msra.mxu0 0.0
    %333 = vmatprep.subr.mxu0 0.0
    %334 = vmatpush2.msra.mxu0 0.0
    %335 = vmatprep.subr.mxu0 0.0
    %336 = vmatpush2.msra.mxu0 0.0
    %337 = vmatprep.subr.mxu0 0.0
    %338 = vmatpush2.msra.mxu0 0.0
    %339 = vmatprep.subr.mxu0 0.0
    %340 = vmatpush2.msra.mxu0 0.0
    %341 = vmatprep.subr.mxu0 0.0
    %342 = vmatpush2.msra.mxu0 0.0
    %343 = vmatprep.mubr.f32.mxu0 0.0
    %344 = vmatmul.mubr.f32.gmra.mxu0 %v277
    %v345 = vpop.f32.mrf.mxu0
    %v346 = vadd.f32 %v273, %v345
    %v347 = vpop.f32.mrf.mxu0
    %348 = vdwg.mxu0
    %s349 = scalar_lea.vmem %s0, 16
    %v350 = vld [vmem:[%s349] sm:$0xff]
    %s351 = scalar_lea.vmem %s1, 64
    %v352 = vld [vmem:[%s351] sm:$0xff]
    %v353 = vld [vmem:[%s351 + $0x8] sm:$0xff]
    %v354 = vld [vmem:[%s351 + $0x10] sm:$0xff]
    %v355 = vld [vmem:[%s351 + $0x18] sm:$0xff]
    %s356 = scalar_lea.vmem %s2, 2
    %v357 = vld [vmem:[%s356] sm:$0x1]
    %v359 = vlaneseq
    %v360 = vshrl.u32 %v359, 7
    %v361 = vsub.s32 0, %v360
    %v362 = vrot.slane %v357, %v361
    %v365 = vsel %vm33, %v350, 0
    %367 = vmatprep.subr.mxu0 0.0
    %368 = vmatpush1.msra.mxu0 0.0
    %369 = vmatprep.subr.mxu0 0.0
    %370 = vmatpush1.msra.mxu0 0.0
    %371 = vmatprep.subr.mxu0 0.0
    %372 = vmatpush1.msra.mxu0 0.0
    %373 = vmatprep.subr.mxu0 0.0
    %374 = vmatpush1.msra.mxu0 0.0
    %375 = vmatprep.subr.mxu0 0.0
    %376 = vmatpush1.msra.mxu0 0.0
    %377 = vmatprep.subr.mxu0 0.0
    %378 = vmatpush1.msra.mxu0 0.0
    %379 = vmatprep.subr.mxu0 0.0
    %380 = vmatpush1.msra.mxu0 0.0
    %381 = vmatprep.subr.mxu0 0.0
    %382 = vmatpush1.msra.mxu0 0.0
    %383 = vmatprep.subr.mxu0 0.0
    %384 = vmatpush1.msra.mxu0 0.0
    %385 = vmatprep.subr.mxu0 0.0
    %386 = vmatpush1.msra.mxu0 0.0
    %387 = vmatprep.subr.mxu0 0.0
    %388 = vmatpush1.msra.mxu0 0.0
    %389 = vmatprep.subr.mxu0 0.0
    %390 = vmatpush1.msra.mxu0 0.0
    %391 = vmatprep.subr.mxu0 0.0
    %392 = vmatpush1.msra.mxu0 %v355
    %393 = vmatprep.subr.mxu0 0.0
    %394 = vmatpush1.msra.mxu0 %v354
    %395 = vmatprep.subr.mxu0 0.0
    %396 = vmatpush1.msra.mxu0 %v353
    %397 = vmatprep.subr.mxu0 0.0
    %398 = vmatpush1.msra.mxu0 %v352
    %399 = vmatprep.subr.mxu0 0.0
    %400 = vmatpush2.msra.mxu0 0.0
    %401 = vmatprep.subr.mxu0 0.0
    %402 = vmatpush2.msra.mxu0 0.0
    %403 = vmatprep.subr.mxu0 0.0
    %404 = vmatpush2.msra.mxu0 0.0
    %405 = vmatprep.subr.mxu0 0.0
    %406 = vmatpush2.msra.mxu0 0.0
    %407 = vmatprep.subr.mxu0 0.0
    %408 = vmatpush2.msra.mxu0 0.0
    %409 = vmatprep.subr.mxu0 0.0
    %410 = vmatpush2.msra.mxu0 0.0
    %411 = vmatprep.subr.mxu0 0.0
    %412 = vmatpush2.msra.mxu0 0.0
    %413 = vmatprep.subr.mxu0 0.0
    %414 = vmatpush2.msra.mxu0 0.0
    %415 = vmatprep.subr.mxu0 0.0
    %416 = vmatpush2.msra.mxu0 0.0
    %417 = vmatprep.subr.mxu0 0.0
    %418 = vmatpush2.msra.mxu0 0.0
    %419 = vmatprep.subr.mxu0 0.0
    %420 = vmatpush2.msra.mxu0 0.0
    %421 = vmatprep.subr.mxu0 0.0
    %422 = vmatpush2.msra.mxu0 0.0
    %423 = vmatprep.subr.mxu0 0.0
    %424 = vmatpush2.msra.mxu0 0.0
    %425 = vmatprep.subr.mxu0 0.0
    %426 = vmatpush2.msra.mxu0 0.0
    %427 = vmatprep.subr.mxu0 0.0
    %428 = vmatpush2.msra.mxu0 0.0
    %429 = vmatprep.subr.mxu0 0.0
    %430 = vmatpush2.msra.mxu0 0.0
    %431 = vmatprep.mubr.f32.mxu0 0.0
    %432 = vmatmul.mubr.f32.gmra.mxu0 %v365
    %v433 = vpop.f32.mrf.mxu0
    %v434 = vadd.f32 %v362, %v433
    %v435 = vpop.f32.mrf.mxu0
    %436 = vdwg.mxu0
    %v437 = vmax.f32 %v434, 0.0
    %s438 = scalar_lea.vmem %s3, 32
    %v439 = vld [vmem:[%s438] sm:$0xff]
    %v440 = vld [vmem:[%s438 + $0x8] sm:$0xff]
    %v442 = vsel %vm202, %v437, 0
    %444 = vmatprep.subr.mxu0 0.0
    %445 = vmatpush1.msra.mxu0 0.0
    %446 = vmatprep.subr.mxu0 0.0
    %447 = vmatpush1.msra.mxu0 0.0
    %448 = vmatprep.subr.mxu0 0.0
    %449 = vmatpush1.msra.mxu0 0.0
    %450 = vmatprep.subr.mxu0 0.0
    %451 = vmatpush1.msra.mxu0 0.0
    %452 = vmatprep.subr.mxu0 0.0
    %453 = vmatpush1.msra.mxu0 0.0
    %454 = vmatprep.subr.mxu0 0.0
    %455 = vmatpush1.msra.mxu0 0.0
    %456 = vmatprep.subr.mxu0 0.0
    %457 = vmatpush1.msra.mxu0 0.0
    %458 = vmatprep.subr.mxu0 0.0
    %459 = vmatpush1.msra.mxu0 0.0
    %460 = vmatprep.subr.mxu0 0.0
    %461 = vmatpush1.msra.mxu0 0.0
    %462 = vmatprep.subr.mxu0 0.0
    %463 = vmatpush1.msra.mxu0 0.0
    %464 = vmatprep.subr.mxu0 0.0
    %465 = vmatpush1.msra.mxu0 0.0
    %466 = vmatprep.subr.mxu0 0.0
    %467 = vmatpush1.msra.mxu0 0.0
    %468 = vmatprep.subr.mxu0 0.0
    %469 = vmatpush1.msra.mxu0 0.0
    %470 = vmatprep.subr.mxu0 0.0
    %471 = vmatpush1.msra.mxu0 0.0
    %472 = vmatprep.subr.mxu0 0.0
    %473 = vmatpush1.msra.mxu0 %v440
    %474 = vmatprep.subr.mxu0 0.0
    %475 = vmatpush1.msra.mxu0 %v439
    %476 = vmatprep.subr.mxu0 0.0
    %477 = vmatpush2.msra.mxu0 0.0
    %478 = vmatprep.subr.mxu0 0.0
    %479 = vmatpush2.msra.mxu0 0.0
    %480 = vmatprep.subr.mxu0 0.0
    %481 = vmatpush2.msra.mxu0 0.0
    %482 = vmatprep.subr.mxu0 0.0
    %483 = vmatpush2.msra.mxu0 0.0
    %484 = vmatprep.subr.mxu0 0.0
    %485 = vmatpush2.msra.mxu0 0.0
    %486 = vmatprep.subr.mxu0 0.0
    %487 = vmatpush2.msra.mxu0 0.0
    %488 = vmatprep.subr.mxu0 0.0
    %489 = vmatpush2.msra.mxu0 0.0
    %490 = vmatprep.subr.mxu0 0.0
    %491 = vmatpush2.msra.mxu0 0.0
    %492 = vmatprep.subr.mxu0 0.0
    %493 = vmatpush2.msra.mxu0 0.0
    %494 = vmatprep.subr.mxu0 0.0
    %495 = vmatpush2.msra.mxu0 0.0
    %496 = vmatprep.subr.mxu0 0.0
    %497 = vmatpush2.msra.mxu0 0.0
    %498 = vmatprep.subr.mxu0 0.0
    %499 = vmatpush2.msra.mxu0 0.0
    %500 = vmatprep.subr.mxu0 0.0
    %501 = vmatpush2.msra.mxu0 0.0
    %502 = vmatprep.subr.mxu0 0.0
    %503 = vmatpush2.msra.mxu0 0.0
    %504 = vmatprep.subr.mxu0 0.0
    %505 = vmatpush2.msra.mxu0 0.0
    %506 = vmatprep.subr.mxu0 0.0
    %507 = vmatpush2.msra.mxu0 0.0
    %508 = vmatprep.mubr.f32.mxu0 0.0
    %509 = vmatmul.mubr.f32.gmra.mxu0 %v442
    %v510 = vpop.f32.mrf.mxu0
    %v511 = vadd.f32 0.0, %v510
    %v512 = vpop.f32.mrf.mxu0
    %513 = vdwg.mxu0
    %v514 = vadd.f32 %v346, %v511
    %v515 = vld [vmem:[%s4] sm:$0x1]
    %v517 = vlaneseq
    %v518 = vshrl.u32 %v517, 7
    %v519 = vsub.s32 0, %v518
    %v520 = vrot.slane %v515, %v519
    %v522 = vadd.f32 %v514, %v520
    %523 = vst [vmem:[#allocation2] sm:$0xff] %v522
    // Predicated region
    $region22: #{multistream_forward.1} parent=1 // pred_check
      _
    $region23: #{multistream_forward.1} parent=1 // pred_check_branch
      %525 = sbr.rel (0) target = $region25
    $region24: #{multistream_forward.1} parent=1 // pred_region
      %s527 = ssub.s32 128, 128
      %528 = vsyncadd [#allocation3], %s527
      %s530 = sshll.u32 [#allocation2], 4
      %s531 = int_to_ptr.vmem [resolvable:$true] %s530
      %533 = dma.vmem_to_hbm [thread:$0]  %s531, 128, %s5, [#allocation3]
    $region25: #{multistream_forward.1} parent=1 // pred_fallthru
      _
    // Predicated region
    $region26: #{multistream_forward.1} parent=1 // pred_check
      _
    $region27: #{multistream_forward.1} parent=1 // pred_check_branch
      %535 = sbr.rel (0) target = $region29
    $region28: #{multistream_forward.1} parent=1 // pred_region
      %536 = dma.done [#allocation3], 128
    $region29: #{multistream_forward.1} parent=1 // pred_fallthru
      _
    %537 = vsyncpa [#allocation3], 1

</llo_original>
